<compile_context>
chip_gen: v7x
topology: tpu7x:2x2x1
jax: 0.10.0
libtpu: 0.0.40
codegen_flags: <defaults>
</compile_context>

<pallas_src>
import jax
import jax.numpy as jnp
from jax.experimental import pallas as pl
from jax.experimental.pallas import tpu as pltpu


def _round_up(x: int, m: int) -> int:
    return ((x + m - 1) // m) * m


def _ssl_head_kernel(x_ref, w1_ref, b1_ref, w2_ref, b2_ref, o_ref):
    # Cast the activation tile to the MXU operand dtype in-kernel (VPU) so the
    # wrapper never materializes an extra padded/cast copy of x in HBM.
    x = x_ref[...].astype(w1_ref.dtype)
    # Hidden layer: Linear(H, H) + ReLU.  f32 accumulation on the MXU.
    h = jnp.dot(x, w1_ref[...], preferred_element_type=jnp.float32)
    h = jnp.maximum(h + b1_ref[...], 0.0)          # bias add + ReLU in f32 (VPU)
    # Output layer: Linear(H, O).
    y = jnp.dot(h.astype(w2_ref.dtype), w2_ref[...],
                preferred_element_type=jnp.float32)
    o_ref[...] = (y + b2_ref[...]).astype(o_ref.dtype)


def prepare_ssl_head_params(w1, b1, w2, b2, compute_dtype=jnp.bfloat16):
    """One-time weight prep (call at init, NOT inside the training step).

    Casts weights to the MXU operand dtype and biases to f32 (epilogue dtype).
    """
    return (jnp.asarray(w1, compute_dtype),
            jnp.asarray(b1, jnp.float32).reshape(1, -1),
            jnp.asarray(w2, compute_dtype),
            jnp.asarray(b2, jnp.float32).reshape(1, -1))


def ssl_head_forward(x, params, *, block_b=1024, min_tiles=4,
                     vmem_limit_bytes=32 * 1024 * 1024):
    """SSLHead forward.

    x:      [B, H] input activations (any float dtype; cast in-kernel)
    params: (w1 [H, H], b1 [1, H], w2 [H, O], b2 [1, O]) from prepare_ssl_head_params
    returns [B, O] in x.dtype.
    """
    w1, b1, w2, b2 = params
    B, H = x.shape
    O = w2.shape[1]

    # Batch tile: aim for >= min_tiles grid steps (megacore split on v7x plus
    # double-buffered DMA/compute overlap), multiple of 8 sublanes, capped at
    # block_b.  Small batches fall back to a single full-dim block (legal:
    # block dim == full array dim).
    TB = max(8, min(block_b, _round_up(pl.cdiv(B, min_tiles), 8)))
    if TB >= B:
        TB = B
    grid = (pl.cdiv(B, TB),)

    return pl.pallas_call(
        _ssl_head_kernel,
        out_shape=jax.ShapeDtypeStruct((B, O), x.dtype),
        grid_spec=pl.GridSpec(
            grid=grid,
            in_specs=[
                # Activation tile: pipelined along the batch grid axis, unpadded.
                pl.BlockSpec((TB, H), lambda i: (i, 0)),
                # Weights / biases: constant index_map -> resident in VMEM.
                pl.BlockSpec((H, H), lambda i: (0, 0)),
                pl.BlockSpec((1, H), lambda i: (0, 0)),
                pl.BlockSpec((H, O), lambda i: (0, 0)),
                pl.BlockSpec((1, O), lambda i: (0, 0)),
            ],
            out_specs=pl.BlockSpec((TB, O), lambda i: (i, 0)),
        ),
        compiler_params=pltpu.CompilerParams(
            dimension_semantics=("parallel",),   # independent batch tiles (2 TCs on v7x)
            vmem_limit_bytes=vmem_limit_bytes,   # tiny footprint; explicit for v7x's 64 MiB
        ),
    )(x, w1, b1, w2, b2)


def init_ssl_head_params(key, hidden_size, output_size, dtype=jnp.float32):
    """Deterministic synthetic init (uniform, PyTorch-Linear-like scale)."""
    k1, k2, k3, k4 = jax.random.split(key, 4)
    bound = 1.0 / (hidden_size ** 0.5)
    w1 = jax.random.uniform(k1, (hidden_size, hidden_size), dtype, -bound, bound)
    b1 = jax.random.uniform(k2, (1, hidden_size), dtype, -bound, bound)
    w2 = jax.random.uniform(k3, (hidden_size, output_size), dtype, -bound, bound)
    b2 = jax.random.uniform(k4, (1, output_size), dtype, -bound, bound)
    return w1, b1, w2, b2


def _reference(x, w1, b1, w2, b2):
    return jnp.maximum(x @ w1 + b1, 0.0) @ w2 + b2


if __name__ == "__main__":
    key = jax.random.PRNGKey(0)
    kx, kp, kx2 = jax.random.split(key, 3)

    # --- Small shape consistent with the module (SSLHead(hidden=32, output=16)) ---
    batch, hidden_size, output_size = 8, 32, 16
    x = jax.random.normal(kx, (batch, hidden_size), jnp.float32)
    w1, b1, w2, b2 = init_ssl_head_params(kp, hidden_size, output_size)
    ref = _reference(x, w1, b1, w2, b2)

    # bf16 MXU operands, f32 accumulation (default fast path); weights prepared once.
    params_bf16 = prepare_ssl_head_params(w1, b1, w2, b2, jnp.bfloat16)
    out_bf16 = jax.block_until_ready(ssl_head_forward(x, params_bf16))
    assert out_bf16.shape == (batch, output_size)
    assert jnp.allclose(out_bf16, ref, atol=2e-2, rtol=2e-2)

    # f32 operand path: must match the reference tightly.
    params_f32 = prepare_ssl_head_params(w1, b1, w2, b2, jnp.float32)
    out_f32 = jax.block_until_ready(ssl_head_forward(x, params_f32))
    assert jnp.allclose(out_f32, ref, atol=1e-5, rtol=1e-5)

    # --- Multi-tile batch with a ragged last tile (exercises grid pipelining,
    #     megacore split, and OOB read/write handling), f32 exact ---
    batch2 = 300
    x2 = jax.random.normal(kx2, (batch2, hidden_size), jnp.float32)
    ref2 = _reference(x2, w1, b1, w2, b2)
    out2 = jax.block_until_ready(ssl_head_forward(x2, params_f32))
    assert out2.shape == (batch2, output_size)
    assert jnp.allclose(out2, ref2, atol=1e-5, rtol=1e-5)

    print("KERNEL_OK")
</pallas_src>

<mosaic_0001>
module attributes {stable_mosaic.version = 11 : i64} {
  func.func @_ssl_head_kernel(%arg0: i32, %arg1: memref<8x32xf32, #tpu.memory_space<vmem>>, %arg2: memref<32x32xbf16, #tpu.memory_space<vmem>>, %arg3: memref<1x32xf32, #tpu.memory_space<vmem>>, %arg4: memref<32x16xbf16, #tpu.memory_space<vmem>>, %arg5: memref<1x16xf32, #tpu.memory_space<vmem>>, %arg6: memref<8x16xf32, #tpu.memory_space<vmem>>) attributes {dimension_semantics = [#tpu.dimension_semantics<parallel>], iteration_bounds = array<i64: 1>, scalar_prefetch = 0 : i64, scratch_operands = 0 : i64, tpu.core_type = #tpu.core_type<tc>, window_params = [{transform_indices = @transform_0, window_bounds = array<i64: 8, 32>}, {pipeline_mode = #tpu.pipeline_mode<synchronous>, transform_indices = @transform_1, window_bounds = array<i64: 32, 32>}, {pipeline_mode = #tpu.pipeline_mode<synchronous>, transform_indices = @transform_2, window_bounds = array<i64: 1, 32>}, {pipeline_mode = #tpu.pipeline_mode<synchronous>, transform_indices = @transform_3, window_bounds = array<i64: 32, 16>}, {pipeline_mode = #tpu.pipeline_mode<synchronous>, transform_indices = @transform_4, window_bounds = array<i64: 1, 16>}, {transform_indices = @transform_5, window_bounds = array<i64: 8, 16>}]} {
    %c0 = arith.constant 0 : index
    %c0_0 = arith.constant 0 : index
    %0 = vector.load %arg1[%c0, %c0_0] : memref<8x32xf32, #tpu.memory_space<vmem>>, vector<8x32xf32>
    %1 = arith.truncf %0 : vector<8x32xf32> to vector<8x32xbf16>
    %c0_1 = arith.constant 0 : index
    %c0_2 = arith.constant 0 : index
    %2 = vector.load %arg2[%c0_1, %c0_2] : memref<32x32xbf16, #tpu.memory_space<vmem>>, vector<32x32xbf16>
    %cst = arith.constant dense<0.000000e+00> : vector<8x32xf32>
    %3 = tpu.matmul %1, %2, %cst {dimension_numbers = #tpu.dot_dimension_numbers<[1], [0], [0], [1], [0, 0, 1, 1], [], []>} : vector<8x32xbf16>, vector<32x32xbf16>, vector<8x32xf32> -> vector<8x32xf32>
    %c0_3 = arith.constant 0 : index
    %c0_4 = arith.constant 0 : index
    %4 = vector.load %arg3[%c0_3, %c0_4] : memref<1x32xf32, #tpu.memory_space<vmem>>, vector<1x32xf32>
    %5 = vector.broadcast %4 : vector<1x32xf32> to vector<8x32xf32>
    %6 = arith.addf %3, %5 : vector<8x32xf32>
    %cst_5 = arith.constant 0.000000e+00 : f32
    %7 = vector.broadcast %cst_5 : f32 to vector<8x32xf32>
    %8 = arith.maximumf %6, %7 : vector<8x32xf32>
    %9 = arith.truncf %8 : vector<8x32xf32> to vector<8x32xbf16>
    %c0_6 = arith.constant 0 : index
    %c0_7 = arith.constant 0 : index
    %10 = vector.load %arg4[%c0_6, %c0_7] : memref<32x16xbf16, #tpu.memory_space<vmem>>, vector<32x16xbf16>
    %cst_8 = arith.constant dense<0.000000e+00> : vector<8x16xf32>
    %11 = tpu.matmul %9, %10, %cst_8 {dimension_numbers = #tpu.dot_dimension_numbers<[1], [0], [0], [1], [0, 0, 1, 1], [], []>} : vector<8x32xbf16>, vector<32x16xbf16>, vector<8x16xf32> -> vector<8x16xf32>
    %c0_9 = arith.constant 0 : index
    %c0_10 = arith.constant 0 : index
    %12 = vector.load %arg5[%c0_9, %c0_10] : memref<1x16xf32, #tpu.memory_space<vmem>>, vector<1x16xf32>
    %13 = vector.broadcast %12 : vector<1x16xf32> to vector<8x16xf32>
    %14 = arith.addf %11, %13 : vector<8x16xf32>
    %c0_11 = arith.constant 0 : index
    %c0_12 = arith.constant 0 : index
    %15 = vector.load %arg6[%c0_11, %c0_12] : memref<8x16xf32, #tpu.memory_space<vmem>>, vector<8x16xf32>
    tpu.vector_store %arg6[%c0_11, %c0_12], %14 {strides = array<i32>} : memref<8x16xf32, #tpu.memory_space<vmem>>, vector<8x16xf32>,
    return
  }
  func.func @transform_0(%arg0: i32) -> (i32, i32) {
    %c0_i32 = arith.constant 0 : i32
    %c0_i32_0 = arith.constant 0 : i32
    return %arg0, %c0_i32 : i32, i32
  }
  func.func @transform_1(%arg0: i32) -> (i32, i32) {
    %c0_i32 = arith.constant 0 : i32
    %c0_i32_0 = arith.constant 0 : i32
    %c0_i32_1 = arith.constant 0 : i32
    return %c0_i32, %c0_i32_0 : i32, i32
  }
  func.func @transform_2(%arg0: i32) -> (i32, i32) {
    %c0_i32 = arith.constant 0 : i32
    %c0_i32_0 = arith.constant 0 : i32
    %c0_i32_1 = arith.constant 0 : i32
    return %c0_i32, %c0_i32_0 : i32, i32
  }
  func.func @transform_3(%arg0: i32) -> (i32, i32) {
    %c0_i32 = arith.constant 0 : i32
    %c0_i32_0 = arith.constant 0 : i32
    %c0_i32_1 = arith.constant 0 : i32
    return %c0_i32, %c0_i32_0 : i32, i32
  }
  func.func @transform_4(%arg0: i32) -> (i32, i32) {
    %c0_i32 = arith.constant 0 : i32
    %c0_i32_0 = arith.constant 0 : i32
    %c0_i32_1 = arith.constant 0 : i32
    return %c0_i32, %c0_i32_0 : i32, i32
  }
  func.func @transform_5(%arg0: i32) -> (i32, i32) {
    %c0_i32 = arith.constant 0 : i32
    %c0_i32_0 = arith.constant 0 : i32
    return %arg0, %c0_i32 : i32, i32
  }
}

</mosaic_0001>

<llo_original>
// kernel: tpu_custom_call.1
$region0: #{tpu_custom_call.1}
  #allocation0 [shape = 'u32[]', space=smem, size = 0x4, offset = 0x4, fixed_abs, tag = 'smem constant byte address 0x4 - core index']
  #allocation1 [shape = 'u32[144,128]{1,0:T(1,128)}', space=vmem, size = 0x12000, scoped, tag = 'internal scratch']
  %s0 = inlined_call_operand.vmem [shape: f32[8,32], index: 0, kind: input, shape index: {}]
  %s1 = inlined_call_operand.vmem [shape: bf16[32,32], index: 1, kind: input, shape index: {}]
  %s2 = inlined_call_operand.vmem [shape: f32[1,32], index: 2, kind: input, shape index: {}]
  %s3 = inlined_call_operand.vmem [shape: bf16[32,16], index: 3, kind: input, shape index: {}]
  %s4 = inlined_call_operand.vmem [shape: f32[1,16], index: 4, kind: input, shape index: {}]
  %s5 = inlined_call_operand.hbm [shape: f32[8,16], index: 5, kind: output, shape index: {}]
  %s6 = sld [smem:[#allocation0]]
  $region30: #{tpu_custom_call.1} parent=0
    _
  %s8 = ssub.s32 1, %s6
  %s9 = scalar_select 0, %s8, %s6
  $region1: #{tpu_custom_call.1} parent=0
    #allocation2 [shape = 'u8[4096]{0}', space=vmem, size = 0x1000, scoped, tag = 'output window, operand 0, single buffered']
    #allocation3 [shape = 's32[1]{0}', space=sflag, size = 0x4, scoped, tag = 'scoped memory for tpu_custom_call.1']
    %10 = vsyncpa [#allocation3], 0
    // Predicated region
    $region2: #{tpu_custom_call.1} parent=1 // pred_check
      _
    $region3: #{tpu_custom_call.1} parent=1 // pred_check_branch
      %12 = sbr.rel (0) target = $region5
    $region4: #{tpu_custom_call.1} parent=1 // pred_region
      _
    $region5: #{tpu_custom_call.1} parent=1 // pred_fallthru
      _
    // Predicated region
    $region6: #{tpu_custom_call.1} parent=1 // pred_check
      _
    $region7: #{tpu_custom_call.1} parent=1 // pred_check_branch
      %14 = sbr.rel (0) target = $region9
    $region8: #{tpu_custom_call.1} parent=1 // pred_region
      _
    $region9: #{tpu_custom_call.1} parent=1 // pred_fallthru
      _
    // Predicated region
    $region10: #{tpu_custom_call.1} parent=1 // pred_check
      _
    $region11: #{tpu_custom_call.1} parent=1 // pred_check_branch
      %16 = sbr.rel (0) target = $region13
    $region12: #{tpu_custom_call.1} parent=1 // pred_region
      _
    $region13: #{tpu_custom_call.1} parent=1 // pred_fallthru
      _
    // Predicated region
    $region14: #{tpu_custom_call.1} parent=1 // pred_check
      _
    $region15: #{tpu_custom_call.1} parent=1 // pred_check_branch
      %18 = sbr.rel (0) target = $region17
    $region16: #{tpu_custom_call.1} parent=1 // pred_region
      _
    $region17: #{tpu_custom_call.1} parent=1 // pred_fallthru
      _
    // Predicated region
    $region18: #{tpu_custom_call.1} parent=1 // pred_check
      _
    $region19: #{tpu_custom_call.1} parent=1 // pred_check_branch
      %20 = sbr.rel (0) target = $region21
    $region20: #{tpu_custom_call.1} parent=1 // pred_region
      _
    $region21: #{tpu_custom_call.1} parent=1 // pred_fallthru
      _
    %v22 = vld [vmem:[%s0] sm:$0xff]
    %v23 = vpack.c.bf16 %v22, %v22
    %v24 = vld [vmem:[%s1] sm:$0xf]
    %v25 = vld [vmem:[%s1 + $0x4] sm:$0xf]
    %v26 = vld [vmem:[%s1 + $0x8] sm:$0xf]
    %v27 = vld [vmem:[%s1 + $0xc] sm:$0xf]
    %v28 = vld [vmem:[%s2] sm:$0x1]
    %v30 = vlaneseq
    %v31 = vshrl.u32 %v30, 7
    %v32 = vsub.s32 0, %v31
    %v33 = vrot.slane %v28, %v32
    %v39 = vunpack.c.l.b16 %v24
    %v40 = vunpack.c.l.b16 %v25
    %v41 = vunpack.c.l.b16 %v26
    %v42 = vunpack.c.l.b16 %v27
    %v43 = vpack.c.b16 %v40, %v39
    %v44 = vpack.c.b16 %v42, %v41
    %vm47 = vcmask 261120
    %v49 = vsel %vm47, %v23, 0
    %51 = vmatprep.subr.bf16.mxu0 0
    %52 = vmatpush1.bf16.msra.mxu0 %v43
    %53 = vmatprep.subr.bf16.mxu0 0
    %54 = vmatpush1.bf16.msra.mxu0 %v44
    %55 = vmatprep.subr.bf16.mxu0 0
    %56 = vmatpush1.bf16.msra.mxu0 0
    %57 = vmatprep.subr.bf16.mxu0 0
    %58 = vmatpush1.bf16.msra.mxu0 0
    %59 = vmatprep.subr.bf16.mxu0 0
    %60 = vmatpush1.bf16.msra.mxu0 0
    %61 = vmatprep.subr.bf16.mxu0 0
    %62 = vmatpush1.bf16.msra.mxu0 0
    %63 = vmatprep.subr.bf16.mxu0 0
    %64 = vmatpush1.bf16.msra.mxu0 0
    %65 = vmatprep.subr.bf16.mxu0 0
    %66 = vmatpush1.bf16.msra.mxu0 0
    %67 = vmatprep.subr.bf16.mxu0 0
    %68 = vmatpush1.bf16.msra.mxu0 0
    %69 = vmatprep.subr.bf16.mxu0 0
    %70 = vmatpush1.bf16.msra.mxu0 0
    %71 = vmatprep.subr.bf16.mxu0 0
    %72 = vmatpush1.bf16.msra.mxu0 0
    %73 = vmatprep.subr.bf16.mxu0 0
    %74 = vmatpush1.bf16.msra.mxu0 0
    %75 = vmatprep.subr.bf16.mxu0 0
    %76 = vmatpush1.bf16.msra.mxu0 0
    %77 = vmatprep.subr.bf16.mxu0 0
    %78 = vmatpush1.bf16.msra.mxu0 0
    %79 = vmatprep.subr.bf16.mxu0 0
    %80 = vmatpush1.bf16.msra.mxu0 0
    %81 = vmatprep.subr.bf16.mxu0 0
    %82 = vmatpush1.bf16.msra.mxu0 0
    %83 = vmatprep.mubr.bf16.mxu0 0
    %84 = vmatmul.mubr.bf16.gmra.mrb[0].mxu0 %v49
    %v85 = vpop.f32.mrb[0].mxu0
    %v86 = vadd.f32 %v33, %v85
    %v87 = vpop.f32.mrb[0].mxu0
    %v88 = vpop.f32.mrb[0].mxu0
    %v89 = vpop.f32.mrb[0].mxu0
    %90 = vdwg.mxu0
    %v91 = vmax.f32 %v86, 0.0
    %v92 = vpack.c.bf16 %v91, %v91
    %v93 = vld [vmem:[%s3] sm:$0xf]
    %v94 = vld [vmem:[%s3 + $0x4] sm:$0xf]
    %v95 = vld [vmem:[%s3 + $0x8] sm:$0xf]
    %v96 = vld [vmem:[%s3 + $0xc] sm:$0xf]
    %v97 = vld [vmem:[%s4] sm:$0x1]
    %v99 = vlaneseq
    %v100 = vshrl.u32 %v99, 7
    %v101 = vsub.s32 0, %v100
    %v102 = vrot.slane %v97, %v101
    %v108 = vunpack.c.l.b16 %v93
    %v109 = vunpack.c.l.b16 %v94
    %v110 = vunpack.c.l.b16 %v95
    %v111 = vunpack.c.l.b16 %v96
    %v112 = vpack.c.b16 %v109, %v108
    %v113 = vpack.c.b16 %v111, %v110
    %v117 = vsel %vm47, %v92, 0
    %119 = vmatprep.subr.bf16.mxu0 0
    %120 = vmatpush1.bf16.msra.mxu0 %v112
    %121 = vmatprep.subr.bf16.mxu0 0
    %122 = vmatpush1.bf16.msra.mxu0 %v113
    %123 = vmatprep.subr.bf16.mxu0 0
    %124 = vmatpush1.bf16.msra.mxu0 0
    %125 = vmatprep.subr.bf16.mxu0 0
    %126 = vmatpush1.bf16.msra.mxu0 0
    %127 = vmatprep.subr.bf16.mxu0 0
    %128 = vmatpush1.bf16.msra.mxu0 0
    %129 = vmatprep.subr.bf16.mxu0 0
    %130 = vmatpush1.bf16.msra.mxu0 0
    %131 = vmatprep.subr.bf16.mxu0 0
    %132 = vmatpush1.bf16.msra.mxu0 0
    %133 = vmatprep.subr.bf16.mxu0 0
    %134 = vmatpush1.bf16.msra.mxu0 0
    %135 = vmatprep.subr.bf16.mxu0 0
    %136 = vmatpush1.bf16.msra.mxu0 0
    %137 = vmatprep.subr.bf16.mxu0 0
    %138 = vmatpush1.bf16.msra.mxu0 0
    %139 = vmatprep.subr.bf16.mxu0 0
    %140 = vmatpush1.bf16.msra.mxu0 0
    %141 = vmatprep.subr.bf16.mxu0 0
    %142 = vmatpush1.bf16.msra.mxu0 0
    %143 = vmatprep.subr.bf16.mxu0 0
    %144 = vmatpush1.bf16.msra.mxu0 0
    %145 = vmatprep.subr.bf16.mxu0 0
    %146 = vmatpush1.bf16.msra.mxu0 0
    %147 = vmatprep.subr.bf16.mxu0 0
    %148 = vmatpush1.bf16.msra.mxu0 0
    %149 = vmatprep.subr.bf16.mxu0 0
    %150 = vmatpush1.bf16.msra.mxu0 0
    %151 = vmatprep.mubr.bf16.mxu0 0
    %152 = vmatmul.mubr.bf16.gmra.mrb[0].mxu0 %v117
    %v153 = vpop.f32.mrb[0].mxu0
    %v154 = vadd.f32 %v102, %v153
    %v155 = vpop.f32.mrb[0].mxu0
    %v156 = vpop.f32.mrb[0].mxu0
    %v157 = vpop.f32.mrb[0].mxu0
    %158 = vdwg.mxu0
    %vm159 = vcmask 130048
    %160 = vst.msk [vmem:[#allocation2] sm:$0xff] %vm159, %v154
    // Predicated region
    $region22: #{tpu_custom_call.1} parent=1 // pred_check
      _
    $region23: #{tpu_custom_call.1} parent=1 // pred_check_branch
      %162 = sbr.rel (0) target = $region25
    $region24: #{tpu_custom_call.1} parent=1 // pred_region
      %s164 = ssub.s32 128, 128
      %165 = vsyncadd [#allocation3], %s164
      %s167 = sshll.u32 [#allocation2], 4
      %s168 = int_to_ptr.vmem [resolvable:$true] %s167
      %170 = dma.vmem_to_hbm [thread:$0]  %s168, 128, %s5, [#allocation3]
    $region25: #{tpu_custom_call.1} parent=1 // pred_fallthru
      _
    // Predicated region
    $region26: #{tpu_custom_call.1} parent=1 // pred_check
      _
    $region27: #{tpu_custom_call.1} parent=1 // pred_check_branch
      %172 = sbr.rel (0) target = $region29
    $region28: #{tpu_custom_call.1} parent=1 // pred_region
      %173 = dma.done [#allocation3], 128
    $region29: #{tpu_custom_call.1} parent=1 // pred_fallthru
      _
    %174 = vsyncpa [#allocation3], 1

</llo_original>
